<compile_context>
chip_gen: v5e
topology: v5e:2x2
jax: 0.10.0
libtpu: 0.0.40
codegen_flags: <defaults>
</compile_context>

<pallas_src>
import functools

import jax
import jax.numpy as jnp
from jax.experimental import pallas as pl
from jax.experimental.pallas import tpu as pltpu

_LANES = 128          # slab lane width / minimum batch-lane tile
_BIAS_LANE = 127      # biases live in the last lane of each weight row-block
_H1 = 8               # per-stream fc1 width (PyTorch: Linear(n_features, 8))
_H2 = 16              # per-stream fc2 width (PyTorch: Linear(8, 16))

# Slab row layout (all rows 128 lanes wide, f32):
_R1 = 0               # rows [0, 16)            : fused layer-1 weights  (transposed)
_R2 = 16              # rows [16, 48)           : fused layer-2 weights  (block-diag, transposed)
_RH = 48              # rows [48, 48+head_rows) : fused head weights     (transposed)


def _round_up(x, m):
    return (x + m - 1) // m * m


# ---------------------------------------------------------------------------
# Kernel: one batch tile, feature-major.
#   xt   (nf_pad, TB)      features in sublanes, batch in lanes
#   slab (48+head_rows, 128) resident fused weights + biases
#   out  (head_rows, TB)   rows [0, n_actions) = dueling Q-values, rest padding
# ---------------------------------------------------------------------------
def _dueling_kernel(xt_ref, slab_ref, out_ref, *, nf_pad, n_actions, head_rows):
    xt = xt_ref[...]                                                    # (nf_pad, TB)

    w1 = slab_ref[_R1:_R1 + 2 * _H1, 0:nf_pad]                          # (16, nf_pad)
    b1 = slab_ref[_R1:_R1 + 2 * _H1, _BIAS_LANE:_BIAS_LANE + 1]         # (16, 1)
    w2 = slab_ref[_R2:_R2 + 2 * _H2, 0:2 * _H1]                         # (32, 16)
    b2 = slab_ref[_R2:_R2 + 2 * _H2, _BIAS_LANE:_BIAS_LANE + 1]         # (32, 1)
    wh = slab_ref[_RH:_RH + head_rows, 0:2 * _H2]                       # (head_rows, 32)
    bh = slab_ref[_RH:_RH + head_rows, _BIAS_LANE:_BIAS_LANE + 1]       # (head_rows, 1)

    h = jnp.maximum(jnp.dot(w1, xt, preferred_element_type=jnp.float32) + b1, 0.0)  # (16, TB)
    h = jnp.maximum(jnp.dot(w2, h, preferred_element_type=jnp.float32) + b2, 0.0)   # (32, TB)
    y = jnp.dot(wh, h, preferred_element_type=jnp.float32) + bh                     # (head_rows, TB)

    # Rows [0, n_actions) = advantage head, row n_actions = value head, rest 0.
    adv = y[0:n_actions, :]
    value = y[n_actions:n_actions + 1, :]
    adv_mean = jnp.sum(adv, axis=0, keepdims=True) * (1.0 / n_actions)

    # Full lane-dense (unmasked) store; only rows [0, n_actions) are meaningful,
    # the wrapper slices them out (cheap: 16 B/row, not 512).
    out_ref[...] = y + (value - adv_mean)


# ---------------------------------------------------------------------------
# Host-side packing of the 12 PyTorch-style parameters into one slab.
# Call ONCE per parameter update, not per forward.
# ---------------------------------------------------------------------------
def pack_params(params, n_features, n_actions):
    nf = n_features
    nf_pad = _round_up(max(nf, 1), 8)
    head_rows = _round_up(n_actions + 1, 8)
    assert n_actions >= 1
    assert nf_pad < _BIAS_LANE, "n_features too large for this slab layout"
    assert 2 * _H2 < _BIAS_LANE

    slab = jnp.zeros((_RH + head_rows, _LANES), jnp.float32)

    # layer 1 (fused): h1 rows 0:8 = value stream, rows 8:16 = adv stream
    slab = slab.at[_R1 + 0:_R1 + _H1, 0:nf].set(params["vw1"].T)
    slab = slab.at[_R1 + _H1:_R1 + 2 * _H1, 0:nf].set(params["aw1"].T)
    slab = slab.at[_R1 + 0:_R1 + _H1, _BIAS_LANE].set(params["vb1"][0])
    slab = slab.at[_R1 + _H1:_R1 + 2 * _H1, _BIAS_LANE].set(params["ab1"][0])

    # layer 2 (block-diagonal): value rows 0:16 read h1[0:8], adv rows 16:32 read h1[8:16]
    slab = slab.at[_R2 + 0:_R2 + _H2, 0:_H1].set(params["vw2"].T)
    slab = slab.at[_R2 + _H2:_R2 + 2 * _H2, _H1:2 * _H1].set(params["aw2"].T)
    slab = slab.at[_R2 + 0:_R2 + _H2, _BIAS_LANE].set(params["vb2"][0])
    slab = slab.at[_R2 + _H2:_R2 + 2 * _H2, _BIAS_LANE].set(params["ab2"][0])

    # head: adv -> rows [0, n_actions) read h2[16:32]; value -> row n_actions reads h2[0:16]
    slab = slab.at[_RH + 0:_RH + n_actions, _H2:2 * _H2].set(params["awh"].T)
    slab = slab.at[_RH + n_actions, 0:_H2].set(params["vwh"][:, 0])
    slab = slab.at[_RH + 0:_RH + n_actions, _BIAS_LANE].set(params["abh"][0])
    slab = slab.at[_RH + n_actions, _BIAS_LANE].set(params["vbh"][0, 0])
    return slab


# ---------------------------------------------------------------------------
# Wrapper
# ---------------------------------------------------------------------------
def dueling_mlp_forward(x, slab, n_actions, *, tile_batch=2048):
    """x: (batch, n_features); slab: pre-packed weights; returns (batch, n_actions) f32."""
    batch, nf = x.shape
    nf_pad = _round_up(max(nf, 1), 8)
    head_rows = _round_up(n_actions + 1, 8)
    assert slab.shape == (_RH + head_rows, _LANES), "slab was packed for different dims"

    # Batch tiling along lanes. Big tiles amortize the ~0.35 us/step overhead, but
    # cap at ~half the padded batch so the grid has >= 2 "parallel" steps and both
    # v7x TensorCores get a shard (no effect on single-TC v5e/v6e).
    tile_batch = _round_up(max(tile_batch, _LANES), _LANES)
    b128 = _round_up(batch, _LANES)
    if b128 >= 2 * _LANES:
        tb = min(tile_batch, _round_up((b128 + 1) // 2, _LANES))
    else:
        tb = b128
    b_pad = _round_up(batch, tb)

    # Feature-major, lane-dense over batch: (nf_pad, b_pad). Padded features/batch
    # columns are zero; padded columns are sliced away after the kernel.
    xt = jnp.pad(x.astype(jnp.float32),
                 ((0, b_pad - batch), (0, nf_pad - nf))).T

    kernel = functools.partial(
        _dueling_kernel, nf_pad=nf_pad, n_actions=n_actions, head_rows=head_rows
    )

    out = pl.pallas_call(
        kernel,
        out_shape=jax.ShapeDtypeStruct((head_rows, b_pad), jnp.float32),
        grid=(b_pad // tb,),
        in_specs=[
            # only x streams per grid step (lane-dense block)
            pl.BlockSpec((nf_pad, tb), lambda i: (0, i)),
            # weight slab: constant block index -> DMA'd once, stays resident in VMEM
            pl.BlockSpec(slab.shape, lambda i: (0, 0)),
        ],
        out_specs=pl.BlockSpec((head_rows, tb), lambda i: (0, i)),
        compiler_params=pltpu.CompilerParams(
            # batch axis is independent -> shard across both TCs on v7x
            dimension_semantics=("parallel",),
        ),
    )(xt, slab)

    # Compact slice (n_actions x batch) -> transpose back to (batch, n_actions).
    return out[0:n_actions, 0:batch].T


# ---------------------------------------------------------------------------
# Reference + init
# ---------------------------------------------------------------------------
def init_params(key, n_features, n_actions):
    """nn.Linear-shaped params, stored transposed (in, out) so the reference does x @ W + b."""
    dims = {
        "v1": (n_features, 8), "v2": (8, 16), "vh": (16, 1),
        "a1": (n_features, 8), "a2": (8, 16), "ah": (16, n_actions),
    }
    params = {}
    for name, (din, dout) in dims.items():
        key, kw, kb = jax.random.split(key, 3)
        bound = 1.0 / jnp.sqrt(jnp.float32(din))
        w = jax.random.uniform(kw, (din, dout), jnp.float32, -bound, bound)
        b = jax.random.uniform(kb, (1, dout), jnp.float32, -bound, bound)
        params[f"{name[0]}w{name[1]}"] = w
        params[f"{name[0]}b{name[1]}"] = b
    return params


def dueling_mlp_ref(x, params):
    x = x.astype(jnp.float32)
    v = jax.nn.relu(x @ params["vw1"] + params["vb1"])
    v = jax.nn.relu(v @ params["vw2"] + params["vb2"])
    value = v @ params["vwh"] + params["vbh"]
    a = jax.nn.relu(x @ params["aw1"] + params["ab1"])
    a = jax.nn.relu(a @ params["aw2"] + params["ab2"])
    adv = a @ params["awh"] + params["abh"]
    return value + (adv - jnp.mean(adv, axis=1, keepdims=True))


if __name__ == "__main__":
    n_features = 4   # maze state features
    n_actions = 4    # up / down / left / right

    key = jax.random.PRNGKey(0)
    key, kx, kx2 = jax.random.split(key, 3)
    params = init_params(key, n_features, n_actions)

    # Pack once per parameter update (hoisted out of the per-call forward path).
    slab = pack_params(params, n_features, n_actions)

    fwd = jax.jit(dueling_mlp_forward, static_argnums=(2,),
                  static_argnames=("tile_batch",))

    # Small case (matches the module's typical act() usage).
    x = jax.random.normal(kx, (2, n_features), jnp.float32)
    out = jax.block_until_ready(fwd(x, slab, n_actions))
    ref = dueling_mlp_ref(x, params)
    assert out.shape == (2, n_actions)
    assert jnp.allclose(out, ref, atol=1e-5, rtol=1e-5), (out, ref)

    # Larger, non-multiple batch to exercise the tiled multi-step grid + padding path.
    xb = jax.random.normal(kx2, (300, n_features), jnp.float32)
    outb = jax.block_until_ready(fwd(xb, slab, n_actions, tile_batch=128))
    refb = dueling_mlp_ref(xb, params)
    assert outb.shape == (300, n_actions)
    assert jnp.allclose(outb, refb, atol=1e-5, rtol=1e-5)

    print("KERNEL_OK")
</pallas_src>

<mosaic_0001>
module attributes {stable_mosaic.version = 11 : i64} {
  func.func @_dueling_kernel(%arg0: i32, %arg1: memref<8x128xf32, #tpu.memory_space<vmem>>, %arg2: memref<56x128xf32, #tpu.memory_space<vmem>>, %arg3: memref<8x128xf32, #tpu.memory_space<vmem>>) attributes {dimension_semantics = [#tpu.dimension_semantics<parallel>], iteration_bounds = array<i64: 1>, scalar_prefetch = 0 : i64, scratch_operands = 0 : i64, tpu.core_type = #tpu.core_type<tc>, window_params = [{transform_indices = @transform_0, window_bounds = array<i64: 8, 128>}, {pipeline_mode = #tpu.pipeline_mode<synchronous>, transform_indices = @transform_1, window_bounds = array<i64: 56, 128>}, {transform_indices = @transform_2, window_bounds = array<i64: 8, 128>}]} {
    %c0 = arith.constant 0 : index
    %c0_0 = arith.constant 0 : index
    %0 = vector.load %arg1[%c0, %c0_0] : memref<8x128xf32, #tpu.memory_space<vmem>>, vector<8x128xf32>
    %c0_1 = arith.constant 0 : index
    %c0_2 = arith.constant 0 : index
    %1 = vector.load %arg2[%c0_1, %c0_2] : memref<56x128xf32, #tpu.memory_space<vmem>>, vector<16x8xf32>
    %c0_3 = arith.constant 0 : index
    %c127 = arith.constant 127 : index
    %2 = vector.load %arg2[%c0_3, %c127] : memref<56x128xf32, #tpu.memory_space<vmem>>, vector<16x1xf32>
    %c16 = arith.constant 16 : index
    %c0_4 = arith.constant 0 : index
    %3 = vector.load %arg2[%c16, %c0_4] : memref<56x128xf32, #tpu.memory_space<vmem>>, vector<32x16xf32>
    %c16_5 = arith.constant 16 : index
    %c127_6 = arith.constant 127 : index
    %4 = vector.load %arg2[%c16_5, %c127_6] : memref<56x128xf32, #tpu.memory_space<vmem>>, vector<32x1xf32>
    %c48 = arith.constant 48 : index
    %c0_7 = arith.constant 0 : index
    %5 = vector.load %arg2[%c48, %c0_7] : memref<56x128xf32, #tpu.memory_space<vmem>>, vector<8x32xf32>
    %c48_8 = arith.constant 48 : index
    %c127_9 = arith.constant 127 : index
    %6 = vector.load %arg2[%c48_8, %c127_9] : memref<56x128xf32, #tpu.memory_space<vmem>>, vector<8x1xf32>
    %cst = arith.constant dense<0.000000e+00> : vector<16x128xf32>
    %7 = tpu.matmul %1, %0, %cst {dimension_numbers = #tpu.dot_dimension_numbers<[1], [0], [0], [1], [0, 0, 1, 1], [], []>} : vector<16x8xf32>, vector<8x128xf32>, vector<16x128xf32> -> vector<16x128xf32>
    %8 = vector.broadcast %2 : vector<16x1xf32> to vector<16x128xf32>
    %9 = arith.addf %7, %8 : vector<16x128xf32>
    %cst_10 = arith.constant 0.000000e+00 : f32
    %10 = vector.broadcast %cst_10 : f32 to vector<16x128xf32>
    %11 = arith.maximumf %9, %10 : vector<16x128xf32>
    %cst_11 = arith.constant dense<0.000000e+00> : vector<32x128xf32>
    %12 = tpu.matmul %3, %11, %cst_11 {dimension_numbers = #tpu.dot_dimension_numbers<[1], [0], [0], [1], [0, 0, 1, 1], [], []>} : vector<32x16xf32>, vector<16x128xf32>, vector<32x128xf32> -> vector<32x128xf32>
    %13 = vector.broadcast %4 : vector<32x1xf32> to vector<32x128xf32>
    %14 = arith.addf %12, %13 : vector<32x128xf32>
    %cst_12 = arith.constant 0.000000e+00 : f32
    %15 = vector.broadcast %cst_12 : f32 to vector<32x128xf32>
    %16 = arith.maximumf %14, %15 : vector<32x128xf32>
    %cst_13 = arith.constant dense<0.000000e+00> : vector<8x128xf32>
    %17 = tpu.matmul %5, %16, %cst_13 {dimension_numbers = #tpu.dot_dimension_numbers<[1], [0], [0], [1], [0, 0, 1, 1], [], []>} : vector<8x32xf32>, vector<32x128xf32>, vector<8x128xf32> -> vector<8x128xf32>
    %18 = vector.broadcast %6 : vector<8x1xf32> to vector<8x128xf32>
    %19 = arith.addf %17, %18 : vector<8x128xf32>
    %20 = vector.extract_strided_slice %19 {offsets = [0, 0], sizes = [4, 128], strides = [1, 1]} : vector<8x128xf32> to vector<4x128xf32>
    %21 = vector.extract_strided_slice %19 {offsets = [4, 0], sizes = [1, 128], strides = [1, 1]} : vector<8x128xf32> to vector<1x128xf32>
    %cst_14 = arith.constant dense<0.000000e+00> : vector<128xf32>
    %22 = vector.multi_reduction <add>, %20, %cst_14 [0] : vector<4x128xf32> to vector<128xf32>
    %23 = vector.shape_cast %22 : vector<128xf32> to vector<1x128xf32>
    %cst_15 = arith.constant 2.500000e-01 : f32
    %24 = vector.broadcast %cst_15 : f32 to vector<1x128xf32>
    %25 = arith.mulf %23, %24 : vector<1x128xf32>
    %26 = arith.subf %21, %25 : vector<1x128xf32>
    %27 = vector.broadcast %26 : vector<1x128xf32> to vector<8x128xf32>
    %28 = arith.addf %19, %27 : vector<8x128xf32>
    %c0_16 = arith.constant 0 : index
    %c0_17 = arith.constant 0 : index
    %29 = vector.load %arg3[%c0_16, %c0_17] : memref<8x128xf32, #tpu.memory_space<vmem>>, vector<8x128xf32>
    tpu.vector_store %arg3[%c0_16, %c0_17], %28 {strides = array<i32>} : memref<8x128xf32, #tpu.memory_space<vmem>>, vector<8x128xf32>,
    return
  }
  func.func @transform_0(%arg0: i32) -> (i32, i32) {
    %c0_i32 = arith.constant 0 : i32
    %c0_i32_0 = arith.constant 0 : i32
    return %c0_i32, %arg0 : i32, i32
  }
  func.func @transform_1(%arg0: i32) -> (i32, i32) {
    %c0_i32 = arith.constant 0 : i32
    %c0_i32_0 = arith.constant 0 : i32
    %c0_i32_1 = arith.constant 0 : i32
    return %c0_i32, %c0_i32_0 : i32, i32
  }
  func.func @transform_2(%arg0: i32) -> (i32, i32) {
    %c0_i32 = arith.constant 0 : i32
    %c0_i32_0 = arith.constant 0 : i32
    return %c0_i32, %arg0 : i32, i32
  }
}

</mosaic_0001>

<llo_original>
// kernel: dueling_mlp_forward.1
$region0: #{dueling_mlp_forward.1}
  #allocation0 [shape = 'u32[]', space=smem, size = 0x4, offset = 0x4, fixed_abs, tag = 'smem constant byte address 0x4 - core index']
  #allocation1 [shape = 'u32[72,128]{1,0:T(1,128)}', space=vmem, size = 0x9000, scoped, tag = 'internal scratch']
  %s0 = inlined_call_operand.vmem [shape: f32[8,128], index: 0, kind: input, shape index: {}]
  %s1 = inlined_call_operand.hbm [shape: f32[56,128], index: 1, kind: input, shape index: {}]
  %s2 = inlined_call_operand.vmem [shape: f32[8,128], index: 2, kind: output, shape index: {}]
  %s3 = sld [smem:[#allocation0]]
  $region22: #{dueling_mlp_forward.1} parent=0
    _
  %s5 = ssub.s32 1, %s3
  %s6 = scalar_select 0, %s5, %s3
  $region1: #{dueling_mlp_forward.1} parent=0
    #allocation2 [shape = 'u8[28672]{0}', space=vmem, size = 0x7000, scoped, tag = 'input window, operand 1, single buffered']
    #allocation3 [shape = 's32[1]{0}', space=sflag, size = 0x4, scoped, tag = 'scoped memory for dueling_mlp_forward.1']
    %7 = vsyncpa [#allocation3], 0
    // Predicated region
    $region2: #{dueling_mlp_forward.1} parent=1 // pred_check
      _
    $region3: #{dueling_mlp_forward.1} parent=1 // pred_check_branch
      %9 = sbr.rel (0) target = $region5
    $region4: #{dueling_mlp_forward.1} parent=1 // pred_region
      _
    $region5: #{dueling_mlp_forward.1} parent=1 // pred_fallthru
      _
    // Predicated region
    $region6: #{dueling_mlp_forward.1} parent=1 // pred_check
      _
    $region7: #{dueling_mlp_forward.1} parent=1 // pred_check_branch
      %11 = sbr.rel (0) target = $region9
    $region8: #{dueling_mlp_forward.1} parent=1 // pred_region
      %13 = vsyncadd [#allocation3], 0
      %s14 = sshll.u32 %s1, 4
      %s15 = int_to_ptr.hbm [resolvable:$true] %s14
      %s16 = sshll.u32 [#allocation2], 4
      %s17 = int_to_ptr.vmem [resolvable:$true] %s16
      %22 = dma.hbm_to_vmem [thread:$0]  %s15, 896, %s17, [#allocation3], 128, 128, 8
    $region9: #{dueling_mlp_forward.1} parent=1 // pred_fallthru
      _
    // Predicated region
    $region10: #{dueling_mlp_forward.1} parent=1 // pred_check
      _
    $region11: #{dueling_mlp_forward.1} parent=1 // pred_check_branch
      %24 = sbr.rel (0) target = $region13
    $region12: #{dueling_mlp_forward.1} parent=1 // pred_region
      %26 = dma.done [#allocation3], 896
    $region13: #{dueling_mlp_forward.1} parent=1 // pred_fallthru
      _
    %v27 = vld [vmem:[%s0] sm:$0xff]
    %v28 = vld [vmem:[#allocation2] sm:$0xff]
    %v29 = vld [vmem:[#allocation2 + $0x8] sm:$0xff]
    %v30 = vld [vmem:[#allocation2 + $0x10] sm:$0xff]
    %v31 = vld [vmem:[#allocation2 + $0x18] sm:$0xff]
    %v32 = vld [vmem:[#allocation2 + $0x20] sm:$0xff]
    %v33 = vld [vmem:[#allocation2 + $0x28] sm:$0xff]
    %v34 = vld [vmem:[#allocation2 + $0x30] sm:$0xff]
    %36 = vset.pattern.permute.xlu0 127
    %37 = vperm.xlu0 %36, %v28
    %v38 = vpop.permute.xlu0 %37
    %41 = vset.pattern.permute.xlu0 127
    %42 = vperm.xlu0 %41, %v29
    %v43 = vpop.permute.xlu0 %42
    %vm45 = vcmask 64512
    %v46 = vsel %vm45, %v28, 0
    %v48 = vsel %vm45, %v29, 0
    %50 = vmatpush.msra.mxu0 0.0
    %51 = vmatpush.msra.mxu0 0.0
    %52 = vmatpush.msra.mxu0 0.0
    %53 = vmatpush.msra.mxu0 0.0
    %54 = vmatpush.msra.mxu0 0.0
    %55 = vmatpush.msra.mxu0 0.0
    %56 = vmatpush.msra.mxu0 0.0
    %57 = vmatpush.msra.mxu0 0.0
    %58 = vmatpush.msra.mxu0 0.0
    %59 = vmatpush.msra.mxu0 0.0
    %60 = vmatpush.msra.mxu0 0.0
    %61 = vmatpush.msra.mxu0 0.0
    %62 = vmatpush.msra.mxu0 0.0
    %63 = vmatpush.msra.mxu0 0.0
    %64 = vmatpush.msra.mxu0 0.0
    %65 = vmatpush.msra.mxu0 %v27
    %66 = vmatmul.f32.gmra.mxu0 %v46
    %v67 = vpop.f32.mrf.mxu0
    %v68 = vadd.f32 %v38, %v67
    %69 = vmatmul.f32.gmra.mxu0 %v48
    %v70 = vpop.f32.mrf.mxu0
    %v71 = vadd.f32 %v43, %v70
    %72 = vdwg.mxu0
    %v73 = vmax.f32 %v68, 0.0
    %v74 = vmax.f32 %v71, 0.0
    %76 = vset.pattern.permute.xlu0 127
    %77 = vperm.xlu0 %76, %v30
    %v78 = vpop.permute.xlu0 %77
    %81 = vset.pattern.permute.xlu0 127
    %82 = vperm.xlu0 %81, %v31
    %v83 = vpop.permute.xlu0 %82
    %86 = vset.pattern.permute.xlu0 127
    %87 = vperm.xlu0 %86, %v32
    %v88 = vpop.permute.xlu0 %87
    %91 = vset.pattern.permute.xlu0 127
    %92 = vperm.xlu0 %91, %v33
    %v93 = vpop.permute.xlu0 %92
    %vm95 = vcmask 130048
    %v96 = vsel %vm95, %v30, 0
    %v98 = vsel %vm95, %v31, 0
    %v100 = vsel %vm95, %v32, 0
    %v102 = vsel %vm95, %v33, 0
    %104 = vmatpush.msra.mxu0 0.0
    %105 = vmatpush.msra.mxu0 0.0
    %106 = vmatpush.msra.mxu0 0.0
    %107 = vmatpush.msra.mxu0 0.0
    %108 = vmatpush.msra.mxu0 0.0
    %109 = vmatpush.msra.mxu0 0.0
    %110 = vmatpush.msra.mxu0 0.0
    %111 = vmatpush.msra.mxu0 0.0
    %112 = vmatpush.msra.mxu0 0.0
    %113 = vmatpush.msra.mxu0 0.0
    %114 = vmatpush.msra.mxu0 0.0
    %115 = vmatpush.msra.mxu0 0.0
    %116 = vmatpush.msra.mxu0 0.0
    %117 = vmatpush.msra.mxu0 0.0
    %118 = vmatpush.msra.mxu0 %v74
    %119 = vmatpush.msra.mxu0 %v73
    %120 = vmatmul.f32.gmra.mxu0 %v96
    %v121 = vpop.f32.mrf.mxu0
    %v122 = vadd.f32 %v78, %v121
    %123 = vmatmul.f32.gmra.mxu0 %v98
    %v124 = vpop.f32.mrf.mxu0
    %v125 = vadd.f32 %v83, %v124
    %126 = vmatmul.f32.gmra.mxu0 %v100
    %v127 = vpop.f32.mrf.mxu0
    %v128 = vadd.f32 %v88, %v127
    %129 = vmatmul.f32.gmra.mxu0 %v102
    %v130 = vpop.f32.mrf.mxu0
    %v131 = vadd.f32 %v93, %v130
    %132 = vdwg.mxu0
    %v133 = vmax.f32 %v122, 0.0
    %v134 = vmax.f32 %v125, 0.0
    %v135 = vmax.f32 %v128, 0.0
    %v136 = vmax.f32 %v131, 0.0
    %138 = vset.pattern.permute.xlu0 127
    %139 = vperm.xlu0 %138, %v34
    %v140 = vpop.permute.xlu0 %139
    %vm142 = vcmask 261120
    %v143 = vsel %vm142, %v34, 0
    %145 = vmatpush.msra.mxu0 0.0
    %146 = vmatpush.msra.mxu0 0.0
    %147 = vmatpush.msra.mxu0 0.0
    %148 = vmatpush.msra.mxu0 0.0
    %149 = vmatpush.msra.mxu0 0.0
    %150 = vmatpush.msra.mxu0 0.0
    %151 = vmatpush.msra.mxu0 0.0
    %152 = vmatpush.msra.mxu0 0.0
    %153 = vmatpush.msra.mxu0 0.0
    %154 = vmatpush.msra.mxu0 0.0
    %155 = vmatpush.msra.mxu0 0.0
    %156 = vmatpush.msra.mxu0 0.0
    %157 = vmatpush.msra.mxu0 %v136
    %158 = vmatpush.msra.mxu0 %v135
    %159 = vmatpush.msra.mxu0 %v134
    %160 = vmatpush.msra.mxu0 %v133
    %161 = vmatmul.f32.gmra.mxu0 %v143
    %v162 = vpop.f32.mrf.mxu0
    %v163 = vadd.f32 %v140, %v162
    %164 = vdwg.mxu0
    %vm165 = vcmask 1043456
    %v166 = vsel %vm165, %v163, 0.0
    %v167 = vrot.slane %v166, 4
    %v168 = vadd.f32 %v166, %v167
    %v169 = vrot.slane %v168, 2
    %v170 = vadd.f32 %v168, %v169
    %v171 = vrot.slane %v170, 1
    %v172 = vadd.f32 %v170, %v171
    %v173 = vmul.f32 %v172, 0.25
    %v174 = vsub.f32 %v163, %v173
    %v175 = vperm.slane %v174, 4
    %v176 = vadd.f32 %v163, %v175
    %177 = vst [vmem:[%s2] sm:$0xff] %v176
    // Predicated region
    $region14: #{dueling_mlp_forward.1} parent=1 // pred_check
      _
    $region15: #{dueling_mlp_forward.1} parent=1 // pred_check_branch
      %179 = sbr.rel (0) target = $region17
    $region16: #{dueling_mlp_forward.1} parent=1 // pred_region
      _
    $region17: #{dueling_mlp_forward.1} parent=1 // pred_fallthru
      _
    // Predicated region
    $region18: #{dueling_mlp_forward.1} parent=1 // pred_check
      _
    $region19: #{dueling_mlp_forward.1} parent=1 // pred_check_branch
      %181 = sbr.rel (0) target = $region21
    $region20: #{dueling_mlp_forward.1} parent=1 // pred_region
      _
    $region21: #{dueling_mlp_forward.1} parent=1 // pred_fallthru
      _
    %182 = vsyncpa [#allocation3], 1

</llo_original>
